<compile_context>
chip_gen: v6e
topology: v6e:2x2x1
jax: 0.10.0
libtpu: 0.0.40
codegen_flags: <defaults>
</compile_context>

<pallas_src>
import jax
import jax.numpy as jnp
from jax.experimental import pallas as pl
from jax.experimental.pallas import tpu as pltpu


# --------------------------------------------------------------------------
# Small helpers
# --------------------------------------------------------------------------
def _round_up(x, m):
    return ((x + m - 1) // m) * m


def _pad2(a, rows, cols):
    return jnp.pad(a, ((0, rows - a.shape[0]), (0, cols - a.shape[1])))


def _pick_tile(n_pad, cap, target):
    """Largest multiple of 128 that divides n_pad and is <= min(cap, target)."""
    limit = max(128, min(n_pad, cap, target))
    best = 128
    t = 256
    while t <= limit:
        if n_pad % t == 0:
            best = t
        t += 128
    return best


def _vmem_limit(est_bytes):
    # Tight-but-safe scoped VMEM limit: 2x the computed buffer usage, floored
    # at 16 MiB, capped at 56 MiB (v7x physical VMEM is 64 MiB).
    return int(min(56 * 2**20, max(16 * 2**20, 2 * est_bytes)))


def _normalize_prelu(out, alpha, out_dtype):
    # F.normalize(out, p=2, dim=-1) == out / max(||out||, 1e-12).
    # rsqrt -> EUP slot; multiply instead of divide on the VPU.
    sumsq = jnp.sum(out * out, axis=-1, keepdims=True)
    inv_n = jax.lax.rsqrt(jnp.maximum(sumsq, 1e-24))
    out = out * inv_n
    return jnp.where(out >= 0.0, out, alpha * out).astype(out_dtype)


# --------------------------------------------------------------------------
# Kernel 1: SAGEConv + PReLU, un-folded (features streamed at width f_pad,
#           W_l / W_r applied in the epilogue). Used when f_pad <= h_pad.
# --------------------------------------------------------------------------
def _sage_prelu_kernel(a_ref, inv_ref, xn_ref, xs_ref, wl_ref, wr_ref, b_ref,
                       al_ref, o_ref, acc_ref):
    """Grid = (row tiles i, reduction tiles k); k innermost.

    a_ref:   [TM, TK]   int8 (or bf16) edge-count tile of A
    inv_ref: [TM, 1]    f32 per-row 1/deg
    xn_ref:  [TK, Fp]   bf16 neighbor features (varies with k)
    xs_ref:  [TM, Fp]   bf16 self features (varies with i only)
    wl_ref:  [Fp, Hp]   bf16 lin_l weight (pre-transposed), resident
    wr_ref:  [Fp, Hp]   bf16 lin_r weight (pre-transposed), resident
    b_ref:   [1,  Hp]   f32 lin_l bias
    al_ref:  [1,  Hp]   f32 PReLU slopes
    o_ref:   [TM, Hp]   output tile (resident across k)
    acc_ref: [TM, Fp]   f32 scratch: running sum of neighbor features
    """
    k = pl.program_id(1)

    @pl.when(k == 0)
    def _():
        acc_ref[...] = jnp.zeros_like(acc_ref)

    a = a_ref[...].astype(jnp.bfloat16)     # counts are small ints: exact in bf16
    acc_ref[...] += jnp.dot(a, xn_ref[...], preferred_element_type=jnp.float32)

    @pl.when(k == pl.num_programs(1) - 1)
    def _():
        # mean = sum * (1/deg), in f32 (exact degree normalization)
        agg = (acc_ref[...] * inv_ref[...]).astype(jnp.bfloat16)
        out = jnp.dot(agg, wl_ref[...], preferred_element_type=jnp.float32)
        out = out + jnp.dot(xs_ref[...], wr_ref[...],
                            preferred_element_type=jnp.float32)
        out = out + b_ref[...]
        o_ref[...] = _normalize_prelu(out, al_ref[...], o_ref.dtype)


def sage_prelu_layer(a, inv_deg, x_bf16, w_l, w_r, b_l, alpha, *, out_dtype,
                     tm, tk):
    """One SAGE+PReLU layer, un-folded. Padded inputs; returns [Np, Hp]."""
    n_pad = a.shape[0]
    f_pad = x_bf16.shape[1]
    h_pad = w_l.shape[1]
    assert n_pad % tm == 0 and n_pad % tk == 0
    grid = (n_pad // tm, n_pad // tk)

    out_bytes = jnp.dtype(out_dtype).itemsize
    est = (2 * tm * tk * a.dtype.itemsize        # A tile (double-buffered)
           + 2 * tm * 128 * 4                    # inv_deg (lane-padded)
           + 2 * tk * f_pad * 2                  # neighbor features
           + 2 * tm * f_pad * 2                  # self features
           + 2 * 2 * f_pad * h_pad * 2           # W_l + W_r (double-buffered)
           + 2 * 2 * 8 * h_pad * 4               # bias + alpha (sublane-padded)
           + 2 * tm * h_pad * out_bytes          # output tile
           + tm * f_pad * 4)                     # f32 accumulator scratch

    return pl.pallas_call(
        _sage_prelu_kernel,
        out_shape=jax.ShapeDtypeStruct((n_pad, h_pad), out_dtype),
        grid_spec=pltpu.PrefetchScalarGridSpec(
            num_scalar_prefetch=0,
            grid=grid,
            in_specs=[
                pl.BlockSpec((tm, tk), lambda i, k: (i, k)),        # A counts
                pl.BlockSpec((tm, 1), lambda i, k: (i, 0)),         # 1/deg
                pl.BlockSpec((tk, f_pad), lambda i, k: (k, 0)),     # neighbor x
                pl.BlockSpec((tm, f_pad), lambda i, k: (i, 0)),     # self x
                pl.BlockSpec((f_pad, h_pad), lambda i, k: (0, 0)),  # W_l resident
                pl.BlockSpec((f_pad, h_pad), lambda i, k: (0, 0)),  # W_r resident
                pl.BlockSpec((1, h_pad), lambda i, k: (0, 0)),      # bias
                pl.BlockSpec((1, h_pad), lambda i, k: (0, 0)),      # PReLU alpha
            ],
            out_specs=pl.BlockSpec((tm, h_pad), lambda i, k: (i, 0)),
            scratch_shapes=[pltpu.VMEM((tm, f_pad), jnp.float32)],
        ),
        compiler_params=pltpu.CompilerParams(
            dimension_semantics=("parallel", "arbitrary"),
            vmem_limit_bytes=_vmem_limit(est),
        ),
    )(a, inv_deg, x_bf16, x_bf16, w_l, w_r, b_l, alpha)


# --------------------------------------------------------------------------
# Kernel 2: SAGEConv + PReLU with W_l / W_r folded into the streamed features
#           (A@(xW_l) == (A@x)@W_l). Used when f_pad > h_pad.
# --------------------------------------------------------------------------
def _sage_prelu_folded_kernel(a_ref, inv_ref, xl_ref, xr_ref, b_ref, al_ref,
                              o_ref, acc_ref):
    """xl = x @ W_l, xr = x @ W_r precomputed; acc/stream width = Hp."""
    k = pl.program_id(1)

    @pl.when(k == 0)
    def _():
        acc_ref[...] = jnp.zeros_like(acc_ref)

    a = a_ref[...].astype(jnp.bfloat16)
    acc_ref[...] += jnp.dot(a, xl_ref[...], preferred_element_type=jnp.float32)

    @pl.when(k == pl.num_programs(1) - 1)
    def _():
        out = acc_ref[...] * inv_ref[...]                       # mean-aggregated xW_l
        out = out + xr_ref[...].astype(jnp.float32) + b_ref[...]
        o_ref[...] = _normalize_prelu(out, al_ref[...], o_ref.dtype)


def sage_prelu_layer_folded(a, inv_deg, xl_bf16, xr_bf16, b_l, alpha, *,
                            out_dtype, tm, tk):
    n_pad = a.shape[0]
    h_pad = xl_bf16.shape[1]
    assert n_pad % tm == 0 and n_pad % tk == 0
    grid = (n_pad // tm, n_pad // tk)

    out_bytes = jnp.dtype(out_dtype).itemsize
    est = (2 * tm * tk * a.dtype.itemsize
           + 2 * tm * 128 * 4
           + 2 * tk * h_pad * 2                  # neighbor xW_l
           + 2 * tm * h_pad * 2                  # self xW_r
           + 2 * 2 * 8 * h_pad * 4
           + 2 * tm * h_pad * out_bytes
           + tm * h_pad * 4)

    return pl.pallas_call(
        _sage_prelu_folded_kernel,
        out_shape=jax.ShapeDtypeStruct((n_pad, h_pad), out_dtype),
        grid_spec=pltpu.PrefetchScalarGridSpec(
            num_scalar_prefetch=0,
            grid=grid,
            in_specs=[
                pl.BlockSpec((tm, tk), lambda i, k: (i, k)),      # A counts
                pl.BlockSpec((tm, 1), lambda i, k: (i, 0)),       # 1/deg
                pl.BlockSpec((tk, h_pad), lambda i, k: (k, 0)),   # x @ W_l
                pl.BlockSpec((tm, h_pad), lambda i, k: (i, 0)),   # x @ W_r
                pl.BlockSpec((1, h_pad), lambda i, k: (0, 0)),    # bias
                pl.BlockSpec((1, h_pad), lambda i, k: (0, 0)),    # PReLU alpha
            ],
            out_specs=pl.BlockSpec((tm, h_pad), lambda i, k: (i, 0)),
            scratch_shapes=[pltpu.VMEM((tm, h_pad), jnp.float32)],
        ),
        compiler_params=pltpu.CompilerParams(
            dimension_semantics=("parallel", "arbitrary"),
            vmem_limit_bytes=_vmem_limit(est),
        ),
    )(a, inv_deg, xl_bf16, xr_bf16, b_l, alpha)


# --------------------------------------------------------------------------
# Glue: adjacency construction, parameters, encoder forward
# --------------------------------------------------------------------------
def build_adjacency(edge_index, node_cnt, n_pad):
    """Edge-count adjacency (un-normalized) in its streamed dtype + f32 1/deg.

    Built once and reused by both layers (and corrupt/clean passes).
    NOTE: edge indices are assumed to lie in [0, node_cnt); out-of-range values
    would silently land in the padded region. The dtype decision uses concrete
    values (eager execution); TODO(synk): make jit-friendly if needed.
    """
    src = edge_index[0].astype(jnp.int32)
    dst = edge_index[1].astype(jnp.int32)

    # in-degree (duplicate edges counted, matching scatter_mean)
    deg = jnp.zeros((n_pad,), jnp.int32).at[dst].add(1)
    inv_deg = (1.0 / jnp.maximum(deg, 1).astype(jnp.float32)).reshape(n_pad, 1)

    if int(jnp.max(deg)) <= 127:
        # per-(dst,src) count <= in-degree <= 127 -> int8 is exact; single
        # 1-byte N^2 scatter pass.
        a = jnp.zeros((n_pad, n_pad), jnp.int8).at[dst, src].add(jnp.int8(1))
    else:
        counts = jnp.zeros((n_pad, n_pad), jnp.int32).at[dst, src].add(1)
        if int(jnp.max(counts)) <= 127:
            a = counts.astype(jnp.int8)
        else:
            # pathological multigraph; bf16 counts stay exact up to 256 duplicates
            a = counts.astype(jnp.bfloat16)
    return a, inv_deg


class EncoderParams:
    """Deterministic f32 parameters matching the module's shapes (unpadded)."""

    def __init__(self, key, input_dim, hidden_dim):
        ks = jax.random.split(key, 4)

        def glorot(k, fan_in, fan_out):
            lim = jnp.sqrt(6.0 / (fan_in + fan_out))
            return jax.random.uniform(k, (fan_in, fan_out), jnp.float32, -lim, lim)

        # weights stored pre-transposed as [F_in, F_out] so kernels compute x @ W
        self.w1_l = glorot(ks[0], input_dim, hidden_dim)
        self.w1_r = glorot(ks[1], input_dim, hidden_dim)
        self.b1_l = jnp.zeros((1, hidden_dim), jnp.float32)
        self.w2_l = glorot(ks[2], hidden_dim, hidden_dim)
        self.w2_r = glorot(ks[3], hidden_dim, hidden_dim)
        self.b2_l = jnp.zeros((1, hidden_dim), jnp.float32)
        # PyTorch PReLU default init = 0.25 per channel
        self.alpha1 = jnp.full((1, hidden_dim), 0.25, jnp.float32)
        self.alpha2 = jnp.full((1, hidden_dim), 0.25, jnp.float32)


def encoder_forward(params, x, edge_index, node_cnt, corrupt=False,
                    perm_key=None, adj=None, *, tm_target=512, tk_target=512):
    input_dim = x.shape[1]
    hidden_dim = params.w1_l.shape[1]

    n_pad = _round_up(node_cnt, 128)
    f_pad = _round_up(input_dim, 128)
    h_pad = _round_up(hidden_dim, 128)

    # Tile selection decoupled from padding; keep >=2 row tiles when possible so
    # the "parallel" row axis can split across both TensorCores (v7x megacore).
    tm = _pick_tile(n_pad, n_pad // 2 if n_pad >= 256 else n_pad, tm_target)
    tk = _pick_tile(n_pad, n_pad, tk_target)

    if adj is None:
        adj = build_adjacency(edge_index, node_cnt, n_pad)
    a, inv_deg = adj

    if corrupt:
        perm = jax.random.permutation(perm_key, node_cnt)  # torch.randperm equiv.
        x = x[perm]

    x_p = _pad2(x, n_pad, f_pad)                 # f32, zero-padded

    b1 = _pad2(params.b1_l, 1, h_pad)
    b2 = _pad2(params.b2_l, 1, h_pad)
    al1 = _pad2(params.alpha1, 1, h_pad)
    al2 = _pad2(params.alpha2, 1, h_pad)

    # Padded node rows of h1 equal PReLU(normalize(b1)) (nonzero if b1 != 0),
    # but their A columns are zero and they are sliced off at the end, so the
    # result for real nodes is unaffected.

    # ---- layer 1 (bf16 output streamed straight into layer 2) ----
    if f_pad > h_pad:
        # Fold linear maps into the streamed features: A@(xW_l) == (A@x)@W_l.
        w1l = _pad2(params.w1_l, f_pad, h_pad)
        w1r = _pad2(params.w1_r, f_pad, h_pad)
        xl = (x_p @ w1l).astype(jnp.bfloat16)
        xr = (x_p @ w1r).astype(jnp.bfloat16)
        h1 = sage_prelu_layer_folded(a, inv_deg, xl, xr, b1, al1,
                                     out_dtype=jnp.bfloat16, tm=tm, tk=tk)
    else:
        w1l = _pad2(params.w1_l, f_pad, h_pad).astype(jnp.bfloat16)
        w1r = _pad2(params.w1_r, f_pad, h_pad).astype(jnp.bfloat16)
        h1 = sage_prelu_layer(a, inv_deg, x_p.astype(jnp.bfloat16), w1l, w1r,
                              b1, al1, out_dtype=jnp.bfloat16, tm=tm, tk=tk)

    # ---- layer 2 (F == H -> un-folded path; f32 final output) ----
    w2l = _pad2(params.w2_l, h_pad, h_pad).astype(jnp.bfloat16)
    w2r = _pad2(params.w2_r, h_pad, h_pad).astype(jnp.bfloat16)
    h2 = sage_prelu_layer(a, inv_deg, h1, w2l, w2r, b2, al2,
                          out_dtype=jnp.float32, tm=tm, tk=tk)

    return h2[:node_cnt, :hidden_dim]


def _reference_forward(params, x, edge_index, node_cnt):
    """Pure-JAX f32 reference of the PyTorch module for validation."""
    src, dst = edge_index[0], edge_index[1]
    a = jnp.zeros((node_cnt, node_cnt), jnp.float32).at[dst, src].add(1.0)
    deg = jnp.sum(a, axis=1, keepdims=True)
    a = a / jnp.maximum(deg, 1.0)

    def layer(h, wl, wr, b, alpha):
        out = (a @ h) @ wl + b + h @ wr
        norm = jnp.sqrt(jnp.sum(out * out, axis=-1, keepdims=True))
        out = out / jnp.maximum(norm, 1e-12)
        return jnp.where(out >= 0, out, alpha * out)

    h = layer(x, params.w1_l, params.w1_r, params.b1_l, params.alpha1)
    h = layer(h, params.w2_l, params.w2_r, params.b2_l, params.alpha2)
    return h


if __name__ == "__main__":
    key = jax.random.PRNGKey(0)

    # ---------------- config A: tiny graph, un-folded path ----------------
    k_x, k_e, k_p, k_x2, k_e2, k_p2 = jax.random.split(key, 6)

    num_nodes, input_dim, hidden_dim, num_edges = 16, 8, 32, 40
    x = jax.random.normal(k_x, (num_nodes, input_dim), jnp.float32)
    edge_index = jax.random.randint(k_e, (2, num_edges), 0, num_nodes, jnp.int32)
    params = EncoderParams(k_p, input_dim, hidden_dim)

    out = encoder_forward(params, x, edge_index, num_nodes)
    out = jax.block_until_ready(out)
    assert out.shape == (num_nodes, hidden_dim)
    assert bool(jnp.all(jnp.isfinite(out)))
    ref = _reference_forward(params, x, edge_index, num_nodes)
    # bf16 feature/weight streaming -> ~1e-2 relative error; outputs are
    # L2-normalized so a loose absolute tolerance is appropriate.
    assert bool(jnp.allclose(out, ref, atol=0.1, rtol=0.05))

    # -------- config B: wider input (folded layer 1), multi-tile grid --------
    num_nodes2, input_dim2, hidden_dim2, num_edges2 = 300, 200, 64, 1200
    x2 = jax.random.normal(k_x2, (num_nodes2, input_dim2), jnp.float32)
    edge_index2 = jax.random.randint(k_e2, (2, num_edges2), 0, num_nodes2,
                                     jnp.int32)
    params2 = EncoderParams(k_p2, input_dim2, hidden_dim2)

    out2 = encoder_forward(params2, x2, edge_index2, num_nodes2, tk_target=128)
    out2 = jax.block_until_ready(out2)
    assert out2.shape == (num_nodes2, hidden_dim2)
    assert bool(jnp.all(jnp.isfinite(out2)))
    ref2 = _reference_forward(params2, x2, edge_index2, num_nodes2)
    assert bool(jnp.allclose(out2, ref2, atol=0.1, rtol=0.05))

    print("KERNEL_OK")
</pallas_src>

<mosaic_0001>
module attributes {stable_mosaic.version = 11 : i64} {
  func.func @_sage_prelu_kernel(%arg0: i32, %arg1: i32, %arg2: memref<128x128xi8, #tpu.memory_space<vmem>>, %arg3: memref<128x1xf32, #tpu.memory_space<vmem>>, %arg4: memref<128x128xbf16, #tpu.memory_space<vmem>>, %arg5: memref<128x128xbf16, #tpu.memory_space<vmem>>, %arg6: memref<128x128xbf16, #tpu.memory_space<vmem>>, %arg7: memref<128x128xbf16, #tpu.memory_space<vmem>>, %arg8: memref<1x128xf32, #tpu.memory_space<vmem>>, %arg9: memref<1x128xf32, #tpu.memory_space<vmem>>, %arg10: memref<128x128xbf16, #tpu.memory_space<vmem>>, %arg11: memref<128x128xf32, #tpu.memory_space<vmem>>) attributes {dimension_semantics = [#tpu.dimension_semantics<parallel>, #tpu.dimension_semantics<arbitrary>], iteration_bounds = array<i64: 1, 1>, scalar_prefetch = 0 : i64, scratch_operands = 1 : i64, tpu.core_type = #tpu.core_type<tc>, window_params = [{transform_indices = @transform_0, window_bounds = array<i64: 128, 128>}, {transform_indices = @transform_1, window_bounds = array<i64: 128, 1>}, {transform_indices = @transform_2, window_bounds = array<i64: 128, 128>}, {transform_indices = @transform_3, window_bounds = array<i64: 128, 128>}, {pipeline_mode = #tpu.pipeline_mode<synchronous>, transform_indices = @transform_4, window_bounds = array<i64: 128, 128>}, {pipeline_mode = #tpu.pipeline_mode<synchronous>, transform_indices = @transform_5, window_bounds = array<i64: 128, 128>}, {pipeline_mode = #tpu.pipeline_mode<synchronous>, transform_indices = @transform_6, window_bounds = array<i64: 1, 128>}, {pipeline_mode = #tpu.pipeline_mode<synchronous>, transform_indices = @transform_7, window_bounds = array<i64: 1, 128>}, {transform_indices = @transform_8, window_bounds = array<i64: 128, 128>}]} {
    %c0_i32 = arith.constant 0 : i32
    %0 = arith.cmpi eq, %arg1, %c0_i32 : i32
    %1 = arith.extui %0 : i1 to i32
    %c0_i32_0 = arith.constant 0 : i32
    %2 = arith.cmpi ne, %1, %c0_i32_0 : i32
    scf.if %2 {
      %cst_10 = arith.constant 0.000000e+00 : f32
      %13 = vector.broadcast %cst_10 : f32 to vector<128x128xf32>
      %c0_11 = arith.constant 0 : index
      %c0_12 = arith.constant 0 : index
      %14 = vector.load %arg11[%c0_11, %c0_12] : memref<128x128xf32, #tpu.memory_space<vmem>>, vector<128x128xf32>
      tpu.vector_store %arg11[%c0_11, %c0_12], %13 {strides = array<i32>} : memref<128x128xf32, #tpu.memory_space<vmem>>, vector<128x128xf32>,
    } else {
    }
    %c0 = arith.constant 0 : index
    %c0_1 = arith.constant 0 : index
    %3 = vector.load %arg2[%c0, %c0_1] : memref<128x128xi8, #tpu.memory_space<vmem>>, vector<128x128xi8>
    %4 = arith.sitofp %3 : vector<128x128xi8> to vector<128x128xbf16>
    %c0_2 = arith.constant 0 : index
    %c0_3 = arith.constant 0 : index
    %5 = vector.load %arg11[%c0_2, %c0_3] : memref<128x128xf32, #tpu.memory_space<vmem>>, vector<128x128xf32>
    %c0_4 = arith.constant 0 : index
    %c0_5 = arith.constant 0 : index
    %6 = vector.load %arg4[%c0_4, %c0_5] : memref<128x128xbf16, #tpu.memory_space<vmem>>, vector<128x128xbf16>
    %cst = arith.constant dense<0.000000e+00> : vector<128x128xf32>
    %7 = tpu.matmul %4, %6, %cst {dimension_numbers = #tpu.dot_dimension_numbers<[1], [0], [0], [1], [0, 0, 1, 1], [], []>} : vector<128x128xbf16>, vector<128x128xbf16>, vector<128x128xf32> -> vector<128x128xf32>
    %8 = arith.addf %5, %7 : vector<128x128xf32>
    %c0_6 = arith.constant 0 : index
    %c0_7 = arith.constant 0 : index
    %9 = vector.load %arg11[%c0_6, %c0_7] : memref<128x128xf32, #tpu.memory_space<vmem>>, vector<128x128xf32>
    tpu.vector_store %arg11[%c0_6, %c0_7], %8 {strides = array<i32>} : memref<128x128xf32, #tpu.memory_space<vmem>>, vector<128x128xf32>,
    %c0_i32_8 = arith.constant 0 : i32
    %10 = arith.cmpi eq, %arg1, %c0_i32_8 : i32
    %11 = arith.extui %10 : i1 to i32
    %c0_i32_9 = arith.constant 0 : i32
    %12 = arith.cmpi ne, %11, %c0_i32_9 : i32
    scf.if %12 {
      %c0_10 = arith.constant 0 : index
      %c0_11 = arith.constant 0 : index
      %13 = vector.load %arg11[%c0_10, %c0_11] : memref<128x128xf32, #tpu.memory_space<vmem>>, vector<128x128xf32>
      %c0_12 = arith.constant 0 : index
      %c0_13 = arith.constant 0 : index
      %14 = vector.load %arg3[%c0_12, %c0_13] : memref<128x1xf32, #tpu.memory_space<vmem>>, vector<128x1xf32>
      %15 = vector.broadcast %14 : vector<128x1xf32> to vector<128x128xf32>
      %16 = arith.mulf %13, %15 : vector<128x128xf32>
      %17 = arith.truncf %16 : vector<128x128xf32> to vector<128x128xbf16>
      %c0_14 = arith.constant 0 : index
      %c0_15 = arith.constant 0 : index
      %18 = vector.load %arg6[%c0_14, %c0_15] : memref<128x128xbf16, #tpu.memory_space<vmem>>, vector<128x128xbf16>
      %cst_16 = arith.constant dense<0.000000e+00> : vector<128x128xf32>
      %19 = tpu.matmul %17, %18, %cst_16 {dimension_numbers = #tpu.dot_dimension_numbers<[1], [0], [0], [1], [0, 0, 1, 1], [], []>} : vector<128x128xbf16>, vector<128x128xbf16>, vector<128x128xf32> -> vector<128x128xf32>
      %c0_17 = arith.constant 0 : index
      %c0_18 = arith.constant 0 : index
      %20 = vector.load %arg5[%c0_17, %c0_18] : memref<128x128xbf16, #tpu.memory_space<vmem>>, vector<128x128xbf16>
      %c0_19 = arith.constant 0 : index
      %c0_20 = arith.constant 0 : index
      %21 = vector.load %arg7[%c0_19, %c0_20] : memref<128x128xbf16, #tpu.memory_space<vmem>>, vector<128x128xbf16>
      %cst_21 = arith.constant dense<0.000000e+00> : vector<128x128xf32>
      %22 = tpu.matmul %20, %21, %cst_21 {dimension_numbers = #tpu.dot_dimension_numbers<[1], [0], [0], [1], [0, 0, 1, 1], [], []>} : vector<128x128xbf16>, vector<128x128xbf16>, vector<128x128xf32> -> vector<128x128xf32>
      %23 = arith.addf %19, %22 : vector<128x128xf32>
      %c0_22 = arith.constant 0 : index
      %c0_23 = arith.constant 0 : index
      %24 = vector.load %arg8[%c0_22, %c0_23] : memref<1x128xf32, #tpu.memory_space<vmem>>, vector<1x128xf32>
      %25 = vector.broadcast %24 : vector<1x128xf32> to vector<128x128xf32>
      %26 = arith.addf %23, %25 : vector<128x128xf32>
      %c0_24 = arith.constant 0 : index
      %c0_25 = arith.constant 0 : index
      %27 = vector.load %arg9[%c0_24, %c0_25] : memref<1x128xf32, #tpu.memory_space<vmem>>, vector<1x128xf32>
      %28 = arith.mulf %26, %26 : vector<128x128xf32>
      %cst_26 = arith.constant dense<0.000000e+00> : vector<128xf32>
      %29 = vector.multi_reduction <add>, %28, %cst_26 [1] : vector<128x128xf32> to vector<128xf32>
      %30 = vector.shape_cast %29 : vector<128xf32> to vector<128x1xf32>
      %cst_27 = arith.constant 1.000000e-24 : f32
      %31 = vector.broadcast %cst_27 : f32 to vector<128x1xf32>
      %32 = arith.maximumf %30, %31 : vector<128x1xf32>
      %33 = math.rsqrt %32 : vector<128x1xf32>
      %34 = vector.broadcast %33 : vector<128x1xf32> to vector<128x128xf32>
      %35 = arith.mulf %26, %34 : vector<128x128xf32>
      %cst_28 = arith.constant 0.000000e+00 : f32
      %36 = vector.broadcast %cst_28 : f32 to vector<128x128xf32>
      %37 = arith.cmpf oge, %35, %36 : vector<128x128xf32>
      %38 = vector.broadcast %27 : vector<1x128xf32> to vector<128x128xf32>
      %39 = arith.mulf %38, %35 : vector<128x128xf32>
      %40 = arith.select %37, %35, %39 : vector<128x128xi1>, vector<128x128xf32>
      %41 = arith.truncf %40 : vector<128x128xf32> to vector<128x128xbf16>
      %c0_29 = arith.constant 0 : index
      %c0_30 = arith.constant 0 : index
      %42 = vector.load %arg10[%c0_29, %c0_30] : memref<128x128xbf16, #tpu.memory_space<vmem>>, vector<128x128xbf16>
      tpu.vector_store %arg10[%c0_29, %c0_30], %41 {strides = array<i32>} : memref<128x128xbf16, #tpu.memory_space<vmem>>, vector<128x128xbf16>,
    } else {
    }
    return
  }
  func.func @transform_0(%arg0: i32, %arg1: i32) -> (i32, i32) {
    %c0_i32 = arith.constant 0 : i32
    return %arg0, %arg1 : i32, i32
  }
  func.func @transform_1(%arg0: i32, %arg1: i32) -> (i32, i32) {
    %c0_i32 = arith.constant 0 : i32
    %c0_i32_0 = arith.constant 0 : i32
    return %arg0, %c0_i32 : i32, i32
  }
  func.func @transform_2(%arg0: i32, %arg1: i32) -> (i32, i32) {
    %c0_i32 = arith.constant 0 : i32
    %c0_i32_0 = arith.constant 0 : i32
    return %arg1, %c0_i32 : i32, i32
  }
  func.func @transform_3(%arg0: i32, %arg1: i32) -> (i32, i32) {
    %c0_i32 = arith.constant 0 : i32
    %c0_i32_0 = arith.constant 0 : i32
    return %arg0, %c0_i32 : i32, i32
  }
  func.func @transform_4(%arg0: i32, %arg1: i32) -> (i32, i32) {
    %c0_i32 = arith.constant 0 : i32
    %c0_i32_0 = arith.constant 0 : i32
    %c0_i32_1 = arith.constant 0 : i32
    return %c0_i32, %c0_i32_0 : i32, i32
  }
  func.func @transform_5(%arg0: i32, %arg1: i32) -> (i32, i32) {
    %c0_i32 = arith.constant 0 : i32
    %c0_i32_0 = arith.constant 0 : i32
    %c0_i32_1 = arith.constant 0 : i32
    return %c0_i32, %c0_i32_0 : i32, i32
  }
  func.func @transform_6(%arg0: i32, %arg1: i32) -> (i32, i32) {
    %c0_i32 = arith.constant 0 : i32
    %c0_i32_0 = arith.constant 0 : i32
    %c0_i32_1 = arith.constant 0 : i32
    return %c0_i32, %c0_i32_0 : i32, i32
  }
  func.func @transform_7(%arg0: i32, %arg1: i32) -> (i32, i32) {
    %c0_i32 = arith.constant 0 : i32
    %c0_i32_0 = arith.constant 0 : i32
    %c0_i32_1 = arith.constant 0 : i32
    return %c0_i32, %c0_i32_0 : i32, i32
  }
  func.func @transform_8(%arg0: i32, %arg1: i32) -> (i32, i32) {
    %c0_i32 = arith.constant 0 : i32
    %c0_i32_0 = arith.constant 0 : i32
    return %arg0, %c0_i32 : i32, i32
  }
}

</mosaic_0001>

<llo_original>
// kernel: tpu_custom_call.1
$region0: #{tpu_custom_call.1}
  #allocation0 [shape = 'u32[]', space=smem, size = 0x4, offset = 0x4, fixed_abs, tag = 'smem constant byte address 0x4 - core index']
  #allocation1 [shape = 'u32[144,128]{1,0:T(1,128)}', space=vmem, size = 0x12000, scoped, tag = 'internal scratch']
  #allocation2 [shape = 'f32[128,128]{1,0:T(8,128)}', space=vmem, size = 0x10000, scoped, tag = 'scratch operand']
  %s0 = inlined_call_operand.hbm [shape: s8[128,128], index: 0, kind: input, shape index: {}]
  %s1 = inlined_call_operand.vmem [shape: f32[128,1], index: 1, kind: input, shape index: {}]
  %s2 = inlined_call_operand.vmem [shape: bf16[128,128], index: 2, kind: input, shape index: {}]
  %s3 = inlined_call_operand.vmem [shape: bf16[128,128], index: 3, kind: input, shape index: {}]
  %s4 = inlined_call_operand.hbm [shape: bf16[128,128], index: 4, kind: input, shape index: {}]
  %s5 = inlined_call_operand.hbm [shape: bf16[128,128], index: 5, kind: input, shape index: {}]
  %s6 = inlined_call_operand.vmem [shape: f32[1,128], index: 6, kind: input, shape index: {}]
  %s7 = inlined_call_operand.vmem [shape: f32[1,128], index: 7, kind: input, shape index: {}]
  %s8 = inlined_call_operand.hbm [shape: bf16[128,128], index: 8, kind: output, shape index: {}]
  %s9 = sld [smem:[#allocation0]]
  $region62: #{tpu_custom_call.1} parent=0
    _
  %s11 = ssub.s32 1, %s9
  %s12 = scalar_select 0, %s11, %s9
  $region1: #{tpu_custom_call.1} parent=0
    #allocation3 [shape = 'u8[16384]{0}', space=vmem, size = 0x4000, scoped, tag = 'input window, operand 0, single buffered']
    #allocation4 [shape = 's32[1]{0}', space=sflag, size = 0x4, scoped, tag = 'scoped memory for tpu_custom_call.1']
    #allocation5 [shape = 's32[1]{0}', space=sflag, size = 0x4, scoped, tag = 'scoped memory for tpu_custom_call.1']
    #allocation6 [shape = 'u8[32768]{0}', space=vmem, size = 0x8000, scoped, tag = 'input window, operand 4, single buffered']
    #allocation7 [shape = 's32[1]{0}', space=sflag, size = 0x4, scoped, tag = 'scoped memory for tpu_custom_call.1']
    #allocation8 [shape = 'u8[32768]{0}', space=vmem, size = 0x8000, scoped, tag = 'input window, operand 5, single buffered']
    #allocation9 [shape = 'u8[32768]{0}', space=vmem, size = 0x8000, scoped, tag = 'output window, operand 0, single buffered']
    %13 = vsyncpa [#allocation4], 0
    %14 = vsyncpa [#allocation7], 0
    %15 = vsyncpa [#allocation5], 0
    // Predicated region
    $region2: #{tpu_custom_call.1} parent=1 // pred_check
      _
    $region3: #{tpu_custom_call.1} parent=1 // pred_check_branch
      %17 = sbr.rel (0) target = $region5
    $region4: #{tpu_custom_call.1} parent=1 // pred_region
      %s19 = ssub.s32 512, 512
      %20 = vsyncadd [#allocation4], %s19
      %s21 = sshll.u32 [#allocation3], 4
      %s22 = int_to_ptr.vmem [resolvable:$true] %s21
      %27 = dma.hbm_to_vmem [thread:$0]  %s0, 512, %s22, [#allocation4], 128, 128, 8
    $region5: #{tpu_custom_call.1} parent=1 // pred_fallthru
      _
    // Predicated region
    $region6: #{tpu_custom_call.1} parent=1 // pred_check
      _
    $region7: #{tpu_custom_call.1} parent=1 // pred_check_branch
      %29 = sbr.rel (0) target = $region9
    $region8: #{tpu_custom_call.1} parent=1 // pred_region
      _
    $region9: #{tpu_custom_call.1} parent=1 // pred_fallthru
      _
    // Predicated region
    $region10: #{tpu_custom_call.1} parent=1 // pred_check
      _
    $region11: #{tpu_custom_call.1} parent=1 // pred_check_branch
      %31 = sbr.rel (0) target = $region13
    $region12: #{tpu_custom_call.1} parent=1 // pred_region
      _
    $region13: #{tpu_custom_call.1} parent=1 // pred_fallthru
      _
    // Predicated region
    $region14: #{tpu_custom_call.1} parent=1 // pred_check
      _
    $region15: #{tpu_custom_call.1} parent=1 // pred_check_branch
      %33 = sbr.rel (0) target = $region17
    $region16: #{tpu_custom_call.1} parent=1 // pred_region
      _
    $region17: #{tpu_custom_call.1} parent=1 // pred_fallthru
      _
    // Predicated region
    $region18: #{tpu_custom_call.1} parent=1 // pred_check
      _
    $region19: #{tpu_custom_call.1} parent=1 // pred_check_branch
      %35 = sbr.rel (0) target = $region21
    $region20: #{tpu_custom_call.1} parent=1 // pred_region
      %s37 = ssub.s32 1024, 1024
      %38 = vsyncadd [#allocation7], %s37
      %s39 = sshll.u32 [#allocation6], 4
      %s40 = int_to_ptr.vmem [resolvable:$true] %s39
      %45 = dma.hbm_to_vmem [thread:$0]  %s4, 1024, %s40, [#allocation7], 64, 64, 4
    $region21: #{tpu_custom_call.1} parent=1 // pred_fallthru
      _
    // Predicated region
    $region22: #{tpu_custom_call.1} parent=1 // pred_check
      _
    $region23: #{tpu_custom_call.1} parent=1 // pred_check_branch
      %47 = sbr.rel (0) target = $region25
    $region24: #{tpu_custom_call.1} parent=1 // pred_region
      %s49 = ssub.s32 1024, 1024
      %50 = vsyncadd [#allocation7], %s49
      %s51 = sshll.u32 [#allocation8], 4
      %s52 = int_to_ptr.vmem [resolvable:$true] %s51
      %57 = dma.hbm_to_vmem [thread:$0]  %s5, 1024, %s52, [#allocation7], 64, 64, 4
    $region25: #{tpu_custom_call.1} parent=1 // pred_fallthru
      _
    // Predicated region
    $region26: #{tpu_custom_call.1} parent=1 // pred_check
      _
    $region27: #{tpu_custom_call.1} parent=1 // pred_check_branch
      %59 = sbr.rel (0) target = $region29
    $region28: #{tpu_custom_call.1} parent=1 // pred_region
      _
    $region29: #{tpu_custom_call.1} parent=1 // pred_fallthru
      _
    // Predicated region
    $region30: #{tpu_custom_call.1} parent=1 // pred_check
      _
    $region31: #{tpu_custom_call.1} parent=1 // pred_check_branch
      %61 = sbr.rel (0) target = $region33
    $region32: #{tpu_custom_call.1} parent=1 // pred_region
      _
    $region33: #{tpu_custom_call.1} parent=1 // pred_fallthru
      _
    // Predicated region
    $region34: #{tpu_custom_call.1} parent=1 // pred_check
      _
    $region35: #{tpu_custom_call.1} parent=1 // pred_check_branch
      %63 = sbr.rel (0) target = $region37
    $region36: #{tpu_custom_call.1} parent=1 // pred_region
      %64 = dma.done [#allocation4], 512
    $region37: #{tpu_custom_call.1} parent=1 // pred_fallthru
      _
    // Predicated region
    $region38: #{tpu_custom_call.1} parent=1 // pred_check
      _
    $region39: #{tpu_custom_call.1} parent=1 // pred_check_branch
      %66 = sbr.rel (0) target = $region41
    $region40: #{tpu_custom_call.1} parent=1 // pred_region
      %67 = dma.done [#allocation7], 1024
    $region41: #{tpu_custom_call.1} parent=1 // pred_fallthru
      _
    // Predicated region
    $region42: #{tpu_custom_call.1} parent=1 // pred_check
      _
    $region43: #{tpu_custom_call.1} parent=1 // pred_check_branch
      %69 = sbr.rel (0) target = $region45
    $region44: #{tpu_custom_call.1} parent=1 // pred_region
      %70 = dma.done [#allocation7], 1024
    $region45: #{tpu_custom_call.1} parent=1 // pred_fallthru
      _
    %p72 = scmp.eq.s32.totalorder 0, 0
    // Predicated region
    $region46: #{tpu_custom_call.1} parent=1 // pred_check
      %p73 = pneg %p72
    $region47: #{tpu_custom_call.1} parent=1 // pred_check_branch
      %75 = sbr.rel (%p73) target = $region49
    $region48: #{tpu_custom_call.1} parent=1 // pred_region
      %76 = vst [vmem:[#allocation2] sm:$0xff] 0.0
      %77 = vst [vmem:[#allocation2 + $0x8] sm:$0xff] 0.0
      %78 = vst [vmem:[#allocation2 + $0x10] sm:$0xff] 0.0
      %79 = vst [vmem:[#allocation2 + $0x18] sm:$0xff] 0.0
      %80 = vst [vmem:[#allocation2 + $0x20] sm:$0xff] 0.0
      %81 = vst [vmem:[#allocation2 + $0x28] sm:$0xff] 0.0
      %82 = vst [vmem:[#allocation2 + $0x30] sm:$0xff] 0.0
      %83 = vst [vmem:[#allocation2 + $0x38] sm:$0xff] 0.0
      %84 = vst [vmem:[#allocation2 + $0x40] sm:$0xff] 0.0
      %85 = vst [vmem:[#allocation2 + $0x48] sm:$0xff] 0.0
      %86 = vst [vmem:[#allocation2 + $0x50] sm:$0xff] 0.0
      %87 = vst [vmem:[#allocation2 + $0x58] sm:$0xff] 0.0
      %88 = vst [vmem:[#allocation2 + $0x60] sm:$0xff] 0.0
      %89 = vst [vmem:[#allocation2 + $0x68] sm:$0xff] 0.0
      %90 = vst [vmem:[#allocation2 + $0x70] sm:$0xff] 0.0
      %91 = vst [vmem:[#allocation2 + $0x78] sm:$0xff] 0.0
    $region49: #{tpu_custom_call.1} parent=1 // pred_fallthru
      _
    %v92 = vld [vmem:[#allocation3] sm:$0xff]
    %v93 = vld [vmem:[#allocation3 + $0x8] sm:$0xff]
    %v94 = vld [vmem:[#allocation3 + $0x10] sm:$0xff]
    %v95 = vld [vmem:[#allocation3 + $0x18] sm:$0xff]
    %v96 = vunpack.c.l.s8.bf16 %v92
    %v97 = vunpack.c.h.s8.bf16 %v92
    %v98 = vunpack.c.l.s8.bf16 %v93
    %v99 = vunpack.c.h.s8.bf16 %v93
    %v100 = vunpack.c.l.s8.bf16 %v94
    %v101 = vunpack.c.h.s8.bf16 %v94
    %v102 = vunpack.c.l.s8.bf16 %v95
    %v103 = vunpack.c.h.s8.bf16 %v95
    %v104 = vld [vmem:[#allocation2] sm:$0xff]
    %v105 = vld [vmem:[#allocation2 + $0x8] sm:$0xff]
    %v106 = vld [vmem:[#allocation2 + $0x10] sm:$0xff]
    %v107 = vld [vmem:[#allocation2 + $0x18] sm:$0xff]
    %v108 = vld [vmem:[#allocation2 + $0x20] sm:$0xff]
    %v109 = vld [vmem:[#allocation2 + $0x28] sm:$0xff]
    %v110 = vld [vmem:[#allocation2 + $0x30] sm:$0xff]
    %v111 = vld [vmem:[#allocation2 + $0x38] sm:$0xff]
    %v112 = vld [vmem:[#allocation2 + $0x40] sm:$0xff]
    %v113 = vld [vmem:[#allocation2 + $0x48] sm:$0xff]
    %v114 = vld [vmem:[#allocation2 + $0x50] sm:$0xff]
    %v115 = vld [vmem:[#allocation2 + $0x58] sm:$0xff]
    %v116 = vld [vmem:[#allocation2 + $0x60] sm:$0xff]
    %v117 = vld [vmem:[#allocation2 + $0x68] sm:$0xff]
    %v118 = vld [vmem:[#allocation2 + $0x70] sm:$0xff]
    %v119 = vld [vmem:[#allocation2 + $0x78] sm:$0xff]
    %v120 = vld [vmem:[%s2] sm:$0xf]
    %v121 = vld [vmem:[%s2 + $0x4] sm:$0xf]
    %v122 = vld [vmem:[%s2 + $0x8] sm:$0xf]
    %v123 = vld [vmem:[%s2 + $0xc] sm:$0xf]
    %v124 = vld [vmem:[%s2 + $0x10] sm:$0xf]
    %v125 = vld [vmem:[%s2 + $0x14] sm:$0xf]
    %v126 = vld [vmem:[%s2 + $0x18] sm:$0xf]
    %v127 = vld [vmem:[%s2 + $0x1c] sm:$0xf]
    %v128 = vld [vmem:[%s2 + $0x20] sm:$0xf]
    %v129 = vld [vmem:[%s2 + $0x24] sm:$0xf]
    %v130 = vld [vmem:[%s2 + $0x28] sm:$0xf]
    %v131 = vld [vmem:[%s2 + $0x2c] sm:$0xf]
    %v132 = vld [vmem:[%s2 + $0x30] sm:$0xf]
    %v133 = vld [vmem:[%s2 + $0x34] sm:$0xf]
    %v134 = vld [vmem:[%s2 + $0x38] sm:$0xf]
    %v135 = vld [vmem:[%s2 + $0x3c] sm:$0xf]
    %v152 = vunpack.c.l.b16 %v120
    %v153 = vunpack.c.l.b16 %v121
    %v154 = vunpack.c.l.b16 %v122
    %v155 = vunpack.c.l.b16 %v123
    %v156 = vunpack.c.l.b16 %v124
    %v157 = vunpack.c.l.b16 %v125
    %v158 = vunpack.c.l.b16 %v126
    %v159 = vunpack.c.l.b16 %v127
    %v160 = vunpack.c.l.b16 %v128
    %v161 = vunpack.c.l.b16 %v129
    %v162 = vunpack.c.l.b16 %v130
    %v163 = vunpack.c.l.b16 %v131
    %v164 = vunpack.c.l.b16 %v132
    %v165 = vunpack.c.l.b16 %v133
    %v166 = vunpack.c.l.b16 %v134
    %v167 = vunpack.c.l.b16 %v135
    %v168 = vpack.c.b16 %v153, %v152
    %v169 = vpack.c.b16 %v155, %v154
    %v170 = vpack.c.b16 %v157, %v156
    %v171 = vpack.c.b16 %v159, %v158
    %v172 = vpack.c.b16 %v161, %v160
    %v173 = vpack.c.b16 %v163, %v162
    %v174 = vpack.c.b16 %v165, %v164
    %v175 = vpack.c.b16 %v167, %v166
    %184 = vmatprep.subr.bf16.mxu0 0
    %185 = vmatpush1.bf16.msra.mxu0 %v175
    %186 = vmatprep.subr.bf16.mxu0 0
    %187 = vmatpush1.bf16.msra.mxu0 %v174
    %188 = vmatprep.subr.bf16.mxu0 0
    %189 = vmatpush1.bf16.msra.mxu0 %v173
    %190 = vmatprep.subr.bf16.mxu0 0
    %191 = vmatpush1.bf16.msra.mxu0 %v172
    %192 = vmatprep.subr.bf16.mxu0 0
    %193 = vmatpush1.bf16.msra.mxu0 %v171
    %194 = vmatprep.subr.bf16.mxu0 0
    %195 = vmatpush1.bf16.msra.mxu0 %v170
    %196 = vmatprep.subr.bf16.mxu0 0
    %197 = vmatpush1.bf16.msra.mxu0 %v169
    %198 = vmatprep.subr.bf16.mxu0 0
    %199 = vmatpush1.bf16.msra.mxu0 %v168
    %200 = vmatprep.subr.bf16.mxu0 0
    %201 = vmatpush2.bf16.msra.mxu0 0
    %202 = vmatprep.subr.bf16.mxu0 0
    %203 = vmatpush2.bf16.msra.mxu0 0
    %204 = vmatprep.subr.bf16.mxu0 0
    %205 = vmatpush2.bf16.msra.mxu0 0
    %206 = vmatprep.subr.bf16.mxu0 0
    %207 = vmatpush2.bf16.msra.mxu0 0
    %208 = vmatprep.subr.bf16.mxu0 0
    %209 = vmatpush2.bf16.msra.mxu0 0
    %210 = vmatprep.subr.bf16.mxu0 0
    %211 = vmatpush2.bf16.msra.mxu0 0
    %212 = vmatprep.subr.bf16.mxu0 0
    %213 = vmatpush2.bf16.msra.mxu0 0
    %214 = vmatprep.subr.bf16.mxu0 0
    %215 = vmatpush2.bf16.msra.mxu0 0
    %216 = vmatprep.mubr.bf16.mxu0 0
    %217 = vmatmul.mubr.bf16.gmra.mxu0 %v96
    %v218 = vpop.f32.mrf.mxu0
    %v219 = vadd.f32 0.0, %v218
    %v220 = vpop.f32.mrf.mxu0
    %v221 = vpop.f32.mrf.mxu0
    %v222 = vadd.f32 0.0, %v221
    %v223 = vpop.f32.mrf.mxu0
    %224 = vmatprep.mubr.bf16.mxu0 0
    %225 = vmatmul.mubr.bf16.gmra.mxu0 %v97
    %v226 = vpop.f32.mrf.mxu0
    %v227 = vadd.f32 0.0, %v226
    %v228 = vpop.f32.mrf.mxu0
    %v229 = vpop.f32.mrf.mxu0
    %v230 = vadd.f32 0.0, %v229
    %v231 = vpop.f32.mrf.mxu0
    %232 = vmatprep.mubr.bf16.mxu0 0
    %233 = vmatmul.mubr.bf16.gmra.mxu0 %v98
    %v234 = vpop.f32.mrf.mxu0
    %v235 = vadd.f32 0.0, %v234
    %v236 = vpop.f32.mrf.mxu0
    %v237 = vpop.f32.mrf.mxu0
    %v238 = vadd.f32 0.0, %v237
    %v239 = vpop.f32.mrf.mxu0
    %240 = vmatprep.mubr.bf16.mxu0 0
    %241 = vmatmul.mubr.bf16.gmra.mxu0 %v99
    %v242 = vpop.f32.mrf.mxu0
    %v243 = vadd.f32 0.0, %v242
    %v244 = vpop.f32.mrf.mxu0
    %v245 = vpop.f32.mrf.mxu0
    %v246 = vadd.f32 0.0, %v245
    %v247 = vpop.f32.mrf.mxu0
    %248 = vmatprep.mubr.bf16.mxu0 0
    %249 = vmatmul.mubr.bf16.gmra.mxu0 %v100
    %v250 = vpop.f32.mrf.mxu0
    %v251 = vadd.f32 0.0, %v250
    %v252 = vpop.f32.mrf.mxu0
    %v253 = vpop.f32.mrf.mxu0
    %v254 = vadd.f32 0.0, %v253
    %v255 = vpop.f32.mrf.mxu0
    %256 = vmatprep.mubr.bf16.mxu0 0
    %257 = vmatmul.mubr.bf16.gmra.mxu0 %v101
    %v258 = vpop.f32.mrf.mxu0
    %v259 = vadd.f32 0.0, %v258
    %v260 = vpop.f32.mrf.mxu0
    %v261 = vpop.f32.mrf.mxu0
    %v262 = vadd.f32 0.0, %v261
    %v263 = vpop.f32.mrf.mxu0
    %264 = vmatprep.mubr.bf16.mxu0 0
    %265 = vmatmul.mubr.bf16.gmra.mxu0 %v102
    %v266 = vpop.f32.mrf.mxu0
    %v267 = vadd.f32 0.0, %v266
    %v268 = vpop.f32.mrf.mxu0
    %v269 = vpop.f32.mrf.mxu0
    %v270 = vadd.f32 0.0, %v269
    %v271 = vpop.f32.mrf.mxu0
    %272 = vmatprep.mubr.bf16.mxu0 0
    %273 = vmatmul.mubr.bf16.gmra.mxu0 %v103
    %v274 = vpop.f32.mrf.mxu0
    %v275 = vadd.f32 0.0, %v274
    %v276 = vpop.f32.mrf.mxu0
    %v277 = vpop.f32.mrf.mxu0
    %v278 = vadd.f32 0.0, %v277
    %v279 = vpop.f32.mrf.mxu0
    %280 = vdwg.mxu0
    %v281 = vadd.f32 %v104, %v219
    %v282 = vadd.f32 %v105, %v222
    %v283 = vadd.f32 %v106, %v227
    %v284 = vadd.f32 %v107, %v230
    %v285 = vadd.f32 %v108, %v235
    %v286 = vadd.f32 %v109, %v238
    %v287 = vadd.f32 %v110, %v243
    %v288 = vadd.f32 %v111, %v246
    %v289 = vadd.f32 %v112, %v251
    %v290 = vadd.f32 %v113, %v254
    %v291 = vadd.f32 %v114, %v259
    %v292 = vadd.f32 %v115, %v262
    %v293 = vadd.f32 %v116, %v267
    %v294 = vadd.f32 %v117, %v270
    %v295 = vadd.f32 %v118, %v275
    %v296 = vadd.f32 %v119, %v278
    %297 = vst [vmem:[#allocation2] sm:$0xff] %v281
    %298 = vst [vmem:[#allocation2 + $0x8] sm:$0xff] %v282
    %299 = vst [vmem:[#allocation2 + $0x10] sm:$0xff] %v283
    %300 = vst [vmem:[#allocation2 + $0x18] sm:$0xff] %v284
    %301 = vst [vmem:[#allocation2 + $0x20] sm:$0xff] %v285
    %302 = vst [vmem:[#allocation2 + $0x28] sm:$0xff] %v286
    %303 = vst [vmem:[#allocation2 + $0x30] sm:$0xff] %v287
    %304 = vst [vmem:[#allocation2 + $0x38] sm:$0xff] %v288
    %305 = vst [vmem:[#allocation2 + $0x40] sm:$0xff] %v289
    %306 = vst [vmem:[#allocation2 + $0x48] sm:$0xff] %v290
    %307 = vst [vmem:[#allocation2 + $0x50] sm:$0xff] %v291
    %308 = vst [vmem:[#allocation2 + $0x58] sm:$0xff] %v292
    %309 = vst [vmem:[#allocation2 + $0x60] sm:$0xff] %v293
    %310 = vst [vmem:[#allocation2 + $0x68] sm:$0xff] %v294
    %311 = vst [vmem:[#allocation2 + $0x70] sm:$0xff] %v295
    %312 = vst [vmem:[#allocation2 + $0x78] sm:$0xff] %v296
    // Predicated region
    $region50: #{tpu_custom_call.1} parent=1 // pred_check
      %p313 = pneg %p72
    $region51: #{tpu_custom_call.1} parent=1 // pred_check_branch
      %315 = sbr.rel (%p313) target = $region53
    $region52: #{tpu_custom_call.1} parent=1 // pred_region
      %v316 = vld [vmem:[#allocation2] sm:$0xff]
      %v317 = vld [vmem:[#allocation2 + $0x8] sm:$0xff]
      %v318 = vld [vmem:[#allocation2 + $0x10] sm:$0xff]
      %v319 = vld [vmem:[#allocation2 + $0x18] sm:$0xff]
      %v320 = vld [vmem:[#allocation2 + $0x20] sm:$0xff]
      %v321 = vld [vmem:[#allocation2 + $0x28] sm:$0xff]
      %v322 = vld [vmem:[#allocation2 + $0x30] sm:$0xff]
      %v323 = vld [vmem:[#allocation2 + $0x38] sm:$0xff]
      %v324 = vld [vmem:[#allocation2 + $0x40] sm:$0xff]
      %v325 = vld [vmem:[#allocation2 + $0x48] sm:$0xff]
      %v326 = vld [vmem:[#allocation2 + $0x50] sm:$0xff]
      %v327 = vld [vmem:[#allocation2 + $0x58] sm:$0xff]
      %v328 = vld [vmem:[#allocation2 + $0x60] sm:$0xff]
      %v329 = vld [vmem:[#allocation2 + $0x68] sm:$0xff]
      %v330 = vld [vmem:[#allocation2 + $0x70] sm:$0xff]
      %v331 = vld [vmem:[#allocation2 + $0x78] sm:$0xff]
      %v332 = vld [vmem:[%s1] sm:$0xff]
      %v333 = vld [vmem:[%s1 + $0x8] sm:$0xff]
      %v334 = vld [vmem:[%s1 + $0x10] sm:$0xff]
      %v335 = vld [vmem:[%s1 + $0x18] sm:$0xff]
      %v336 = vld [vmem:[%s1 + $0x20] sm:$0xff]
      %v337 = vld [vmem:[%s1 + $0x28] sm:$0xff]
      %v338 = vld [vmem:[%s1 + $0x30] sm:$0xff]
      %v339 = vld [vmem:[%s1 + $0x38] sm:$0xff]
      %v340 = vld [vmem:[%s1 + $0x40] sm:$0xff]
      %v341 = vld [vmem:[%s1 + $0x48] sm:$0xff]
      %v342 = vld [vmem:[%s1 + $0x50] sm:$0xff]
      %v343 = vld [vmem:[%s1 + $0x58] sm:$0xff]
      %v344 = vld [vmem:[%s1 + $0x60] sm:$0xff]
      %v345 = vld [vmem:[%s1 + $0x68] sm:$0xff]
      %v346 = vld [vmem:[%s1 + $0x70] sm:$0xff]
      %v347 = vld [vmem:[%s1 + $0x78] sm:$0xff]
      %349 = vset.pattern.permute.xlu0 0
      %350 = vperm.xlu0 %349, %v332
      %v351 = vpop.permute.xlu0 %350
      %354 = vset.pattern.permute.xlu0 0
      %355 = vperm.xlu0 %354, %v333
      %v356 = vpop.permute.xlu0 %355
      %359 = vset.pattern.permute.xlu0 0
      %360 = vperm.xlu0 %359, %v334
      %v361 = vpop.permute.xlu0 %360
      %364 = vset.pattern.permute.xlu0 0
      %365 = vperm.xlu0 %364, %v335
      %v366 = vpop.permute.xlu0 %365
      %369 = vset.pattern.permute.xlu0 0
      %370 = vperm.xlu0 %369, %v336
      %v371 = vpop.permute.xlu0 %370
      %374 = vset.pattern.permute.xlu0 0
      %375 = vperm.xlu0 %374, %v337
      %v376 = vpop.permute.xlu0 %375
      %379 = vset.pattern.permute.xlu0 0
      %380 = vperm.xlu0 %379, %v338
      %v381 = vpop.permute.xlu0 %380
      %384 = vset.pattern.permute.xlu0 0
      %385 = vperm.xlu0 %384, %v339
      %v386 = vpop.permute.xlu0 %385
      %389 = vset.pattern.permute.xlu0 0
      %390 = vperm.xlu0 %389, %v340
      %v391 = vpop.permute.xlu0 %390
      %394 = vset.pattern.permute.xlu0 0
      %395 = vperm.xlu0 %394, %v341
      %v396 = vpop.permute.xlu0 %395
      %399 = vset.pattern.permute.xlu0 0
      %400 = vperm.xlu0 %399, %v342
      %v401 = vpop.permute.xlu0 %400
      %404 = vset.pattern.permute.xlu0 0
      %405 = vperm.xlu0 %404, %v343
      %v406 = vpop.permute.xlu0 %405
      %409 = vset.pattern.permute.xlu0 0
      %410 = vperm.xlu0 %409, %v344
      %v411 = vpop.permute.xlu0 %410
      %414 = vset.pattern.permute.xlu0 0
      %415 = vperm.xlu0 %414, %v345
      %v416 = vpop.permute.xlu0 %415
      %419 = vset.pattern.permute.xlu0 0
      %420 = vperm.xlu0 %419, %v346
      %v421 = vpop.permute.xlu0 %420
      %424 = vset.pattern.permute.xlu0 0
      %425 = vperm.xlu0 %424, %v347
      %v426 = vpop.permute.xlu0 %425
      %v428 = vmul.f32 %v316, %v351
      %v429 = vmul.f32 %v317, %v356
      %v430 = vmul.f32 %v318, %v361
      %v431 = vmul.f32 %v319, %v366
      %v432 = vmul.f32 %v320, %v371
      %v433 = vmul.f32 %v321, %v376
      %v434 = vmul.f32 %v322, %v381
      %v435 = vmul.f32 %v323, %v386
      %v436 = vmul.f32 %v324, %v391
      %v437 = vmul.f32 %v325, %v396
      %v438 = vmul.f32 %v326, %v401
      %v439 = vmul.f32 %v327, %v406
      %v440 = vmul.f32 %v328, %v411
      %v441 = vmul.f32 %v329, %v416
      %v442 = vmul.f32 %v330, %v421
      %v443 = vmul.f32 %v331, %v426
      %v444 = vpack.c.bf16 %v429, %v428
      %v445 = vpack.c.bf16 %v431, %v430
      %v446 = vpack.c.bf16 %v433, %v432
      %v447 = vpack.c.bf16 %v435, %v434
      %v448 = vpack.c.bf16 %v437, %v436
      %v449 = vpack.c.bf16 %v439, %v438
      %v450 = vpack.c.bf16 %v441, %v440
      %v451 = vpack.c.bf16 %v443, %v442
      %v452 = vld [vmem:[#allocation6] sm:$0xf]
      %v453 = vld [vmem:[#allocation6 + $0x4] sm:$0xf]
      %v454 = vld [vmem:[#allocation6 + $0x8] sm:$0xf]
      %v455 = vld [vmem:[#allocation6 + $0xc] sm:$0xf]
      %v456 = vld [vmem:[#allocation6 + $0x10] sm:$0xf]
      %v457 = vld [vmem:[#allocation6 + $0x14] sm:$0xf]
      %v458 = vld [vmem:[#allocation6 + $0x18] sm:$0xf]
      %v459 = vld [vmem:[#allocation6 + $0x1c] sm:$0xf]
      %v460 = vld [vmem:[#allocation6 + $0x20] sm:$0xf]
      %v461 = vld [vmem:[#allocation6 + $0x24] sm:$0xf]
      %v462 = vld [vmem:[#allocation6 + $0x28] sm:$0xf]
      %v463 = vld [vmem:[#allocation6 + $0x2c] sm:$0xf]
      %v464 = vld [vmem:[#allocation6 + $0x30] sm:$0xf]
      %v465 = vld [vmem:[#allocation6 + $0x34] sm:$0xf]
      %v466 = vld [vmem:[#allocation6 + $0x38] sm:$0xf]
      %v467 = vld [vmem:[#allocation6 + $0x3c] sm:$0xf]
      %v468 = vld [vmem:[%s3] sm:$0xf]
      %v469 = vld [vmem:[%s3 + $0x4] sm:$0xf]
      %v470 = vld [vmem:[%s3 + $0x8] sm:$0xf]
      %v471 = vld [vmem:[%s3 + $0xc] sm:$0xf]
      %v472 = vld [vmem:[%s3 + $0x10] sm:$0xf]
      %v473 = vld [vmem:[%s3 + $0x14] sm:$0xf]
      %v474 = vld [vmem:[%s3 + $0x18] sm:$0xf]
      %v475 = vld [vmem:[%s3 + $0x1c] sm:$0xf]
      %v476 = vld [vmem:[%s3 + $0x20] sm:$0xf]
      %v477 = vld [vmem:[%s3 + $0x24] sm:$0xf]
      %v478 = vld [vmem:[%s3 + $0x28] sm:$0xf]
      %v479 = vld [vmem:[%s3 + $0x2c] sm:$0xf]
      %v480 = vld [vmem:[%s3 + $0x30] sm:$0xf]
      %v481 = vld [vmem:[%s3 + $0x34] sm:$0xf]
      %v482 = vld [vmem:[%s3 + $0x38] sm:$0xf]
      %v483 = vld [vmem:[%s3 + $0x3c] sm:$0xf]
      %v484 = vld [vmem:[#allocation8] sm:$0xf]
      %v485 = vld [vmem:[#allocation8 + $0x4] sm:$0xf]
      %v486 = vld [vmem:[#allocation8 + $0x8] sm:$0xf]
      %v487 = vld [vmem:[#allocation8 + $0xc] sm:$0xf]
      %v488 = vld [vmem:[#allocation8 + $0x10] sm:$0xf]
      %v489 = vld [vmem:[#allocation8 + $0x14] sm:$0xf]
      %v490 = vld [vmem:[#allocation8 + $0x18] sm:$0xf]
      %v491 = vld [vmem:[#allocation8 + $0x1c] sm:$0xf]
      %v492 = vld [vmem:[#allocation8 + $0x20] sm:$0xf]
      %v493 = vld [vmem:[#allocation8 + $0x24] sm:$0xf]
      %v494 = vld [vmem:[#allocation8 + $0x28] sm:$0xf]
      %v495 = vld [vmem:[#allocation8 + $0x2c] sm:$0xf]
      %v496 = vld [vmem:[#allocation8 + $0x30] sm:$0xf]
      %v497 = vld [vmem:[#allocation8 + $0x34] sm:$0xf]
      %v498 = vld [vmem:[#allocation8 + $0x38] sm:$0xf]
      %v499 = vld [vmem:[#allocation8 + $0x3c] sm:$0xf]
      %v516 = vunpack.c.l.b16 %v468
      %v517 = vunpack.c.l.b16 %v469
      %v518 = vunpack.c.l.b16 %v470
      %v519 = vunpack.c.l.b16 %v471
      %v520 = vunpack.c.l.b16 %v472
      %v521 = vunpack.c.l.b16 %v473
      %v522 = vunpack.c.l.b16 %v474
      %v523 = vunpack.c.l.b16 %v475
      %v524 = vunpack.c.l.b16 %v476
      %v525 = vunpack.c.l.b16 %v477
      %v526 = vunpack.c.l.b16 %v478
      %v527 = vunpack.c.l.b16 %v479
      %v528 = vunpack.c.l.b16 %v480
      %v529 = vunpack.c.l.b16 %v481
      %v530 = vunpack.c.l.b16 %v482
      %v531 = vunpack.c.l.b16 %v483
      %v532 = vpack.c.b16 %v517, %v516
      %v533 = vpack.c.b16 %v519, %v518
      %v534 = vpack.c.b16 %v521, %v520
      %v535 = vpack.c.b16 %v523, %v522
      %v536 = vpack.c.b16 %v525, %v524
      %v537 = vpack.c.b16 %v527, %v526
      %v538 = vpack.c.b16 %v529, %v528
      %v539 = vpack.c.b16 %v531, %v530
      %v564 = vunpack.c.l.b16 %v484
      %v565 = vunpack.c.l.b16 %v485
      %v566 = vunpack.c.l.b16 %v486
      %v567 = vunpack.c.l.b16 %v487
      %v568 = vunpack.c.l.b16 %v488
      %v569 = vunpack.c.l.b16 %v489
      %v570 = vunpack.c.l.b16 %v490
      %v571 = vunpack.c.l.b16 %v491
      %v572 = vunpack.c.l.b16 %v492
      %v573 = vunpack.c.l.b16 %v493
      %v574 = vunpack.c.l.b16 %v494
      %v575 = vunpack.c.l.b16 %v495
      %v576 = vunpack.c.l.b16 %v496
      %v577 = vunpack.c.l.b16 %v497
      %v578 = vunpack.c.l.b16 %v498
      %v579 = vunpack.c.l.b16 %v499
      %v580 = vpack.c.b16 %v565, %v564
      %v581 = vpack.c.b16 %v567, %v566
      %v582 = vpack.c.b16 %v569, %v568
      %v583 = vpack.c.b16 %v571, %v570
      %v584 = vpack.c.b16 %v573, %v572
      %v585 = vpack.c.b16 %v575, %v574
      %v586 = vpack.c.b16 %v577, %v576
      %v587 = vpack.c.b16 %v579, %v578
      %596 = vmatprep.subr.bf16.mxu0 0
      %597 = vmatpush1.bf16.msra.mxu0 %v587
      %598 = vmatprep.subr.bf16.mxu0 0
      %599 = vmatpush1.bf16.msra.mxu0 %v586
      %600 = vmatprep.subr.bf16.mxu0 0
      %601 = vmatpush1.bf16.msra.mxu0 %v585
      %602 = vmatprep.subr.bf16.mxu0 0
      %603 = vmatpush1.bf16.msra.mxu0 %v584
      %604 = vmatprep.subr.bf16.mxu0 0
      %605 = vmatpush1.bf16.msra.mxu0 %v583
      %606 = vmatprep.subr.bf16.mxu0 0
      %607 = vmatpush1.bf16.msra.mxu0 %v582
      %608 = vmatprep.subr.bf16.mxu0 0
      %609 = vmatpush1.bf16.msra.mxu0 %v581
      %610 = vmatprep.subr.bf16.mxu0 0
      %611 = vmatpush1.bf16.msra.mxu0 %v580
      %612 = vmatprep.subr.bf16.mxu0 0
      %613 = vmatpush2.bf16.msra.mxu0 0
      %614 = vmatprep.subr.bf16.mxu0 0
      %615 = vmatpush2.bf16.msra.mxu0 0
      %616 = vmatprep.subr.bf16.mxu0 0
      %617 = vmatpush2.bf16.msra.mxu0 0
      %618 = vmatprep.subr.bf16.mxu0 0
      %619 = vmatpush2.bf16.msra.mxu0 0
      %620 = vmatprep.subr.bf16.mxu0 0
      %621 = vmatpush2.bf16.msra.mxu0 0
      %622 = vmatprep.subr.bf16.mxu0 0
      %623 = vmatpush2.bf16.msra.mxu0 0
      %624 = vmatprep.subr.bf16.mxu0 0
      %625 = vmatpush2.bf16.msra.mxu0 0
      %626 = vmatprep.subr.bf16.mxu0 0
      %627 = vmatpush2.bf16.msra.mxu0 0
      %628 = vmatprep.mubr.bf16.mxu0 0
      %629 = vmatmul.mubr.bf16.gmra.mxu0 %v532
      %v630 = vpop.f32.mrf.mxu0
      %v631 = vadd.f32 0.0, %v630
      %v632 = vpop.f32.mrf.mxu0
      %v633 = vpop.f32.mrf.mxu0
      %v634 = vadd.f32 0.0, %v633
      %v635 = vpop.f32.mrf.mxu0
      %636 = vmatprep.mubr.bf16.mxu0 0
      %637 = vmatmul.mubr.bf16.gmra.mxu0 %v533
      %v638 = vpop.f32.mrf.mxu0
      %v639 = vadd.f32 0.0, %v638
      %v640 = vpop.f32.mrf.mxu0
      %v641 = vpop.f32.mrf.mxu0
      %v642 = vadd.f32 0.0, %v641
      %v643 = vpop.f32.mrf.mxu0
      %644 = vmatprep.mubr.bf16.mxu0 0
      %645 = vmatmul.mubr.bf16.gmra.mxu0 %v534
      %v646 = vpop.f32.mrf.mxu0
      %v647 = vadd.f32 0.0, %v646
      %v648 = vpop.f32.mrf.mxu0
      %v649 = vpop.f32.mrf.mxu0
      %v650 = vadd.f32 0.0, %v649
      %v651 = vpop.f32.mrf.mxu0
      %652 = vmatprep.mubr.bf16.mxu0 0
      %653 = vmatmul.mubr.bf16.gmra.mxu0 %v535
      %v654 = vpop.f32.mrf.mxu0
      %v655 = vadd.f32 0.0, %v654
      %v656 = vpop.f32.mrf.mxu0
      %v657 = vpop.f32.mrf.mxu0
      %v658 = vadd.f32 0.0, %v657
      %v659 = vpop.f32.mrf.mxu0
      %660 = vmatprep.mubr.bf16.mxu0 0
      %661 = vmatmul.mubr.bf16.gmra.mxu0 %v536
      %v662 = vpop.f32.mrf.mxu0
      %v663 = vadd.f32 0.0, %v662
      %v664 = vpop.f32.mrf.mxu0
      %v665 = vpop.f32.mrf.mxu0
      %v666 = vadd.f32 0.0, %v665
      %v667 = vpop.f32.mrf.mxu0
      %668 = vmatprep.mubr.bf16.mxu0 0
      %669 = vmatmul.mubr.bf16.gmra.mxu0 %v537
      %v670 = vpop.f32.mrf.mxu0
      %v671 = vadd.f32 0.0, %v670
      %v672 = vpop.f32.mrf.mxu0
      %v673 = vpop.f32.mrf.mxu0
      %v674 = vadd.f32 0.0, %v673
      %v675 = vpop.f32.mrf.mxu0
      %676 = vmatprep.mubr.bf16.mxu0 0
      %677 = vmatmul.mubr.bf16.gmra.mxu0 %v538
      %v678 = vpop.f32.mrf.mxu0
      %v679 = vadd.f32 0.0, %v678
      %v680 = vpop.f32.mrf.mxu0
      %v681 = vpop.f32.mrf.mxu0
      %v682 = vadd.f32 0.0, %v681
      %v683 = vpop.f32.mrf.mxu0
      %684 = vmatprep.mubr.bf16.mxu0 0
      %685 = vmatmul.mubr.bf16.gmra.mxu0 %v539
      %v686 = vpop.f32.mrf.mxu0
      %v687 = vadd.f32 0.0, %v686
      %v688 = vpop.f32.mrf.mxu0
      %v689 = vpop.f32.mrf.mxu0
      %v690 = vadd.f32 0.0, %v689
      %v691 = vpop.f32.mrf.mxu0
      %692 = vdwg.mxu0
      %v709 = vunpack.c.l.b16 %v452
      %v710 = vunpack.c.l.b16 %v453
      %v711 = vunpack.c.l.b16 %v454
      %v712 = vunpack.c.l.b16 %v455
      %v713 = vunpack.c.l.b16 %v456
      %v714 = vunpack.c.l.b16 %v457
      %v715 = vunpack.c.l.b16 %v458
      %v716 = vunpack.c.l.b16 %v459
      %v717 = vunpack.c.l.b16 %v460
      %v718 = vunpack.c.l.b16 %v461
      %v719 = vunpack.c.l.b16 %v462
      %v720 = vunpack.c.l.b16 %v463
      %v721 = vunpack.c.l.b16 %v464
      %v722 = vunpack.c.l.b16 %v465
      %v723 = vunpack.c.l.b16 %v466
      %v724 = vunpack.c.l.b16 %v467
      %v725 = vpack.c.b16 %v710, %v709
      %v726 = vpack.c.b16 %v712, %v711
      %v727 = vpack.c.b16 %v714, %v713
      %v728 = vpack.c.b16 %v716, %v715
      %v729 = vpack.c.b16 %v718, %v717
      %v730 = vpack.c.b16 %v720, %v719
      %v731 = vpack.c.b16 %v722, %v721
      %v732 = vpack.c.b16 %v724, %v723
      %741 = vmatprep.subr.bf16.mxu0 0
      %742 = vmatpush1.bf16.msra.mxu0 %v732
      %743 = vmatprep.subr.bf16.mxu0 0
      %744 = vmatpush1.bf16.msra.mxu0 %v731
      %745 = vmatprep.subr.bf16.mxu0 0
      %746 = vmatpush1.bf16.msra.mxu0 %v730
      %747 = vmatprep.subr.bf16.mxu0 0
      %748 = vmatpush1.bf16.msra.mxu0 %v729
      %749 = vmatprep.subr.bf16.mxu0 0
      %750 = vmatpush1.bf16.msra.mxu0 %v728
      %751 = vmatprep.subr.bf16.mxu0 0
      %752 = vmatpush1.bf16.msra.mxu0 %v727
      %753 = vmatprep.subr.bf16.mxu0 0
      %754 = vmatpush1.bf16.msra.mxu0 %v726
      %755 = vmatprep.subr.bf16.mxu0 0
      %756 = vmatpush1.bf16.msra.mxu0 %v725
      %757 = vmatprep.subr.bf16.mxu0 0
      %758 = vmatpush2.bf16.msra.mxu0 0
      %759 = vmatprep.subr.bf16.mxu0 0
      %760 = vmatpush2.bf16.msra.mxu0 0
      %761 = vmatprep.subr.bf16.mxu0 0
      %762 = vmatpush2.bf16.msra.mxu0 0
      %763 = vmatprep.subr.bf16.mxu0 0
      %764 = vmatpush2.bf16.msra.mxu0 0
      %765 = vmatprep.subr.bf16.mxu0 0
      %766 = vmatpush2.bf16.msra.mxu0 0
      %767 = vmatprep.subr.bf16.mxu0 0
      %768 = vmatpush2.bf16.msra.mxu0 0
      %769 = vmatprep.subr.bf16.mxu0 0
      %770 = vmatpush2.bf16.msra.mxu0 0
      %771 = vmatprep.subr.bf16.mxu0 0
      %772 = vmatpush2.bf16.msra.mxu0 0
      %773 = vmatprep.mubr.bf16.mxu0 0
      %774 = vmatmul.mubr.bf16.gmra.mxu0 %v444
      %v775 = vpop.f32.mrf.mxu0
      %v776 = vadd.f32 %v631, %v775
      %v777 = vpop.f32.mrf.mxu0
      %v778 = vpop.f32.mrf.mxu0
      %v779 = vadd.f32 %v634, %v778
      %v780 = vpop.f32.mrf.mxu0
      %781 = vmatprep.mubr.bf16.mxu0 0
      %782 = vmatmul.mubr.bf16.gmra.mxu0 %v445
      %v783 = vpop.f32.mrf.mxu0
      %v784 = vadd.f32 %v639, %v783
      %v785 = vpop.f32.mrf.mxu0
      %v786 = vpop.f32.mrf.mxu0
      %v787 = vadd.f32 %v642, %v786
      %v788 = vpop.f32.mrf.mxu0
      %789 = vmatprep.mubr.bf16.mxu0 0
      %790 = vmatmul.mubr.bf16.gmra.mxu0 %v446
      %v791 = vpop.f32.mrf.mxu0
      %v792 = vadd.f32 %v647, %v791
      %v793 = vpop.f32.mrf.mxu0
      %v794 = vpop.f32.mrf.mxu0
      %v795 = vadd.f32 %v650, %v794
      %v796 = vpop.f32.mrf.mxu0
      %797 = vmatprep.mubr.bf16.mxu0 0
      %798 = vmatmul.mubr.bf16.gmra.mxu0 %v447
      %v799 = vpop.f32.mrf.mxu0
      %v800 = vadd.f32 %v655, %v799
      %v801 = vpop.f32.mrf.mxu0
      %v802 = vpop.f32.mrf.mxu0
      %v803 = vadd.f32 %v658, %v802
      %v804 = vpop.f32.mrf.mxu0
      %805 = vmatprep.mubr.bf16.mxu0 0
      %806 = vmatmul.mubr.bf16.gmra.mxu0 %v448
      %v807 = vpop.f32.mrf.mxu0
      %v808 = vadd.f32 %v663, %v807
      %v809 = vpop.f32.mrf.mxu0
      %v810 = vpop.f32.mrf.mxu0
      %v811 = vadd.f32 %v666, %v810
      %v812 = vpop.f32.mrf.mxu0
      %813 = vmatprep.mubr.bf16.mxu0 0
      %814 = vmatmul.mubr.bf16.gmra.mxu0 %v449
      %v815 = vpop.f32.mrf.mxu0
      %v816 = vadd.f32 %v671, %v815
      %v817 = vpop.f32.mrf.mxu0
      %v818 = vpop.f32.mrf.mxu0
      %v819 = vadd.f32 %v674, %v818
      %v820 = vpop.f32.mrf.mxu0
      %821 = vmatprep.mubr.bf16.mxu0 0
      %822 = vmatmul.mubr.bf16.gmra.mxu0 %v450
      %v823 = vpop.f32.mrf.mxu0
      %v824 = vadd.f32 %v679, %v823
      %v825 = vpop.f32.mrf.mxu0
      %v826 = vpop.f32.mrf.mxu0
      %v827 = vadd.f32 %v682, %v826
      %v828 = vpop.f32.mrf.mxu0
      %829 = vmatprep.mubr.bf16.mxu0 0
      %830 = vmatmul.mubr.bf16.gmra.mxu0 %v451
      %v831 = vpop.f32.mrf.mxu0
      %v832 = vadd.f32 %v687, %v831
      %v833 = vpop.f32.mrf.mxu0
      %v834 = vpop.f32.mrf.mxu0
      %v835 = vadd.f32 %v690, %v834
      %v836 = vpop.f32.mrf.mxu0
      %837 = vdwg.mxu0
      %v838 = vld [vmem:[%s6] sm:$0x1]
      %v840 = vlaneseq
      %v841 = vshrl.u32 %v840, 7
      %v842 = vsub.s32 0, %v841
      %v843 = vrot.slane %v838, %v842
      %v845 = vadd.f32 %v776, %v843
      %v846 = vadd.f32 %v779, %v843
      %v847 = vadd.f32 %v784, %v843
      %v848 = vadd.f32 %v787, %v843
      %v849 = vadd.f32 %v792, %v843
      %v850 = vadd.f32 %v795, %v843
      %v851 = vadd.f32 %v800, %v843
      %v852 = vadd.f32 %v803, %v843
      %v853 = vadd.f32 %v808, %v843
      %v854 = vadd.f32 %v811, %v843
      %v855 = vadd.f32 %v816, %v843
      %v856 = vadd.f32 %v819, %v843
      %v857 = vadd.f32 %v824, %v843
      %v858 = vadd.f32 %v827, %v843
      %v859 = vadd.f32 %v832, %v843
      %v860 = vadd.f32 %v835, %v843
      %v861 = vld [vmem:[%s7] sm:$0x1]
      %v862 = vmul.f32 %v845, %v845
      %v863 = vmul.f32 %v846, %v846
      %v864 = vmul.f32 %v847, %v847
      %v865 = vmul.f32 %v848, %v848
      %v866 = vmul.f32 %v849, %v849
      %v867 = vmul.f32 %v850, %v850
      %v868 = vmul.f32 %v851, %v851
      %v869 = vmul.f32 %v852, %v852
      %v870 = vmul.f32 %v853, %v853
      %v871 = vmul.f32 %v854, %v854
      %v872 = vmul.f32 %v855, %v855
      %v873 = vmul.f32 %v856, %v856
      %v874 = vmul.f32 %v857, %v857
      %v875 = vmul.f32 %v858, %v858
      %v876 = vmul.f32 %v859, %v859
      %v877 = vmul.f32 %v860, %v860
      %878 = vadd.xlane.f32.xlu0 %v862
      %v879 = vpop.xlane.xlu0 %878
      %880 = vadd.xlane.f32.xlu0 %v863
      %v881 = vpop.xlane.xlu0 %880
      %882 = vadd.xlane.f32.xlu0 %v864
      %v883 = vpop.xlane.xlu0 %882
      %884 = vadd.xlane.f32.xlu0 %v865
      %v885 = vpop.xlane.xlu0 %884
      %886 = vadd.xlane.f32.xlu0 %v866
      %v887 = vpop.xlane.xlu0 %886
      %888 = vadd.xlane.f32.xlu0 %v867
      %v889 = vpop.xlane.xlu0 %888
      %890 = vadd.xlane.f32.xlu0 %v868
      %v891 = vpop.xlane.xlu0 %890
      %892 = vadd.xlane.f32.xlu0 %v869
      %v893 = vpop.xlane.xlu0 %892
      %894 = vadd.xlane.f32.xlu0 %v870
      %v895 = vpop.xlane.xlu0 %894
      %896 = vadd.xlane.f32.xlu0 %v871
      %v897 = vpop.xlane.xlu0 %896
      %898 = vadd.xlane.f32.xlu0 %v872
      %v899 = vpop.xlane.xlu0 %898
      %900 = vadd.xlane.f32.xlu0 %v873
      %v901 = vpop.xlane.xlu0 %900
      %902 = vadd.xlane.f32.xlu0 %v874
      %v903 = vpop.xlane.xlu0 %902
      %904 = vadd.xlane.f32.xlu0 %v875
      %v905 = vpop.xlane.xlu0 %904
      %906 = vadd.xlane.f32.xlu0 %v876
      %v907 = vpop.xlane.xlu0 %906
      %908 = vadd.xlane.f32.xlu0 %v877
      %v909 = vpop.xlane.xlu0 %908
      %v910 = vmax.f32 %v879, 1e-24
      %v911 = vmax.f32 %v881, 1e-24
      %v912 = vmax.f32 %v883, 1e-24
      %v913 = vmax.f32 %v885, 1e-24
      %v914 = vmax.f32 %v887, 1e-24
      %v915 = vmax.f32 %v889, 1e-24
      %v916 = vmax.f32 %v891, 1e-24
      %v917 = vmax.f32 %v893, 1e-24
      %v918 = vmax.f32 %v895, 1e-24
      %v919 = vmax.f32 %v897, 1e-24
      %v920 = vmax.f32 %v899, 1e-24
      %v921 = vmax.f32 %v901, 1e-24
      %v922 = vmax.f32 %v903, 1e-24
      %v923 = vmax.f32 %v905, 1e-24
      %v924 = vmax.f32 %v907, 1e-24
      %v925 = vmax.f32 %v909, 1e-24
      %v926 = vrsqrt.pop %v910
      %v927 = vrsqrt.pop %v911
      %v928 = vrsqrt.pop %v912
      %v929 = vrsqrt.pop %v913
      %v930 = vrsqrt.pop %v914
      %v931 = vrsqrt.pop %v915
      %v932 = vrsqrt.pop %v916
      %v933 = vrsqrt.pop %v917
      %v934 = vrsqrt.pop %v918
      %v935 = vrsqrt.pop %v919
      %v936 = vrsqrt.pop %v920
      %v937 = vrsqrt.pop %v921
      %v938 = vrsqrt.pop %v922
      %v939 = vrsqrt.pop %v923
      %v940 = vrsqrt.pop %v924
      %v941 = vrsqrt.pop %v925
      %v942 = vmul.f32 %v845, %v926
      %v943 = vmul.f32 %v846, %v927
      %v944 = vmul.f32 %v847, %v928
      %v945 = vmul.f32 %v848, %v929
      %v946 = vmul.f32 %v849, %v930
      %v947 = vmul.f32 %v850, %v931
      %v948 = vmul.f32 %v851, %v932
      %v949 = vmul.f32 %v852, %v933
      %v950 = vmul.f32 %v853, %v934
      %v951 = vmul.f32 %v854, %v935
      %v952 = vmul.f32 %v855, %v936
      %v953 = vmul.f32 %v856, %v937
      %v954 = vmul.f32 %v857, %v938
      %v955 = vmul.f32 %v858, %v939
      %v956 = vmul.f32 %v859, %v940
      %v957 = vmul.f32 %v860, %v941
      %vm958 = vcmp.ge.f32.partialorder %v942, 0.0
      %vm959 = vcmp.ge.f32.partialorder %v943, 0.0
      %vm960 = vcmp.ge.f32.partialorder %v944, 0.0
      %vm961 = vcmp.ge.f32.partialorder %v945, 0.0
      %vm962 = vcmp.ge.f32.partialorder %v946, 0.0
      %vm963 = vcmp.ge.f32.partialorder %v947, 0.0
      %vm964 = vcmp.ge.f32.partialorder %v948, 0.0
      %vm965 = vcmp.ge.f32.partialorder %v949, 0.0
      %vm966 = vcmp.ge.f32.partialorder %v950, 0.0
      %vm967 = vcmp.ge.f32.partialorder %v951, 0.0
      %vm968 = vcmp.ge.f32.partialorder %v952, 0.0
      %vm969 = vcmp.ge.f32.partialorder %v953, 0.0
      %vm970 = vcmp.ge.f32.partialorder %v954, 0.0
      %vm971 = vcmp.ge.f32.partialorder %v955, 0.0
      %vm972 = vcmp.ge.f32.partialorder %v956, 0.0
      %vm973 = vcmp.ge.f32.partialorder %v957, 0.0
      %v975 = vlaneseq
      %v976 = vshrl.u32 %v975, 7
      %v977 = vsub.s32 0, %v976
      %v978 = vrot.slane %v861, %v977
      %v980 = vmul.f32 %v978, %v942
      %v981 = vmul.f32 %v978, %v943
      %v982 = vmul.f32 %v978, %v944
      %v983 = vmul.f32 %v978, %v945
      %v984 = vmul.f32 %v978, %v946
      %v985 = vmul.f32 %v978, %v947
      %v986 = vmul.f32 %v978, %v948
      %v987 = vmul.f32 %v978, %v949
      %v988 = vmul.f32 %v978, %v950
      %v989 = vmul.f32 %v978, %v951
      %v990 = vmul.f32 %v978, %v952
      %v991 = vmul.f32 %v978, %v953
      %v992 = vmul.f32 %v978, %v954
      %v993 = vmul.f32 %v978, %v955
      %v994 = vmul.f32 %v978, %v956
      %v995 = vmul.f32 %v978, %v957
      %v996 = vsel %vm958, %v942, %v980
      %v997 = vsel %vm959, %v943, %v981
      %v998 = vsel %vm960, %v944, %v982
      %v999 = vsel %vm961, %v945, %v983
      %v1000 = vsel %vm962, %v946, %v984
      %v1001 = vsel %vm963, %v947, %v985
      %v1002 = vsel %vm964, %v948, %v986
      %v1003 = vsel %vm965, %v949, %v987
      %v1004 = vsel %vm966, %v950, %v988
      %v1005 = vsel %vm967, %v951, %v989
      %v1006 = vsel %vm968, %v952, %v990
      %v1007 = vsel %vm969, %v953, %v991
      %v1008 = vsel %vm970, %v954, %v992
      %v1009 = vsel %vm971, %v955, %v993
      %v1010 = vsel %vm972, %v956, %v994
      %v1011 = vsel %vm973, %v957, %v995
      %v1012 = vpack.c.bf16 %v997, %v996
      %v1013 = vpack.c.bf16 %v999, %v998
      %v1014 = vpack.c.bf16 %v1001, %v1000
      %v1015 = vpack.c.bf16 %v1003, %v1002
      %v1016 = vpack.c.bf16 %v1005, %v1004
      %v1017 = vpack.c.bf16 %v1007, %v1006
      %v1018 = vpack.c.bf16 %v1009, %v1008
      %v1019 = vpack.c.bf16 %v1011, %v1010
      %v1028 = vunpack.c.l.b16 %v1012
      %v1029 = vunpack.c.h.b16 %v1012
      %v1030 = vunpack.c.l.b16 %v1013
      %v1031 = vunpack.c.h.b16 %v1013
      %v1032 = vunpack.c.l.b16 %v1014
      %v1033 = vunpack.c.h.b16 %v1014
      %v1034 = vunpack.c.l.b16 %v1015
      %v1035 = vunpack.c.h.b16 %v1015
      %v1036 = vunpack.c.l.b16 %v1016
      %v1037 = vunpack.c.h.b16 %v1016
      %v1038 = vunpack.c.l.b16 %v1017
      %v1039 = vunpack.c.h.b16 %v1017
      %v1040 = vunpack.c.l.b16 %v1018
      %v1041 = vunpack.c.h.b16 %v1018
      %v1042 = vunpack.c.l.b16 %v1019
      %v1043 = vunpack.c.h.b16 %v1019
      %v1044 = vpack.c.b16 %v1028, %v1028
      %v1045 = vpack.c.b16 %v1029, %v1029
      %v1046 = vpack.c.b16 %v1030, %v1030
      %v1047 = vpack.c.b16 %v1031, %v1031
      %v1048 = vpack.c.b16 %v1032, %v1032
      %v1049 = vpack.c.b16 %v1033, %v1033
      %v1050 = vpack.c.b16 %v1034, %v1034
      %v1051 = vpack.c.b16 %v1035, %v1035
      %v1052 = vpack.c.b16 %v1036, %v1036
      %v1053 = vpack.c.b16 %v1037, %v1037
      %v1054 = vpack.c.b16 %v1038, %v1038
      %v1055 = vpack.c.b16 %v1039, %v1039
      %v1056 = vpack.c.b16 %v1040, %v1040
      %v1057 = vpack.c.b16 %v1041, %v1041
      %v1058 = vpack.c.b16 %v1042, %v1042
      %v1059 = vpack.c.b16 %v1043, %v1043
      %1076 = vst [vmem:[#allocation9] sm:$0xf] %v1044
      %1077 = vst [vmem:[#allocation9 + $0x4] sm:$0xf] %v1045
      %1078 = vst [vmem:[#allocation9 + $0x8] sm:$0xf] %v1046
      %1079 = vst [vmem:[#allocation9 + $0xc] sm:$0xf] %v1047
      %1080 = vst [vmem:[#allocation9 + $0x10] sm:$0xf] %v1048
      %1081 = vst [vmem:[#allocation9 + $0x14] sm:$0xf] %v1049
      %1082 = vst [vmem:[#allocation9 + $0x18] sm:$0xf] %v1050
      %1083 = vst [vmem:[#allocation9 + $0x1c] sm:$0xf] %v1051
      %1084 = vst [vmem:[#allocation9 + $0x20] sm:$0xf] %v1052
      %1085 = vst [vmem:[#allocation9 + $0x24] sm:$0xf] %v1053
      %1086 = vst [vmem:[#allocation9 + $0x28] sm:$0xf] %v1054
      %1087 = vst [vmem:[#allocation9 + $0x2c] sm:$0xf] %v1055
      %1088 = vst [vmem:[#allocation9 + $0x30] sm:$0xf] %v1056
      %1089 = vst [vmem:[#allocation9 + $0x34] sm:$0xf] %v1057
      %1090 = vst [vmem:[#allocation9 + $0x38] sm:$0xf] %v1058
      %1091 = vst [vmem:[#allocation9 + $0x3c] sm:$0xf] %v1059
    $region53: #{tpu_custom_call.1} parent=1 // pred_fallthru
      _
    // Predicated region
    $region54: #{tpu_custom_call.1} parent=1 // pred_check
      _
    $region55: #{tpu_custom_call.1} parent=1 // pred_check_branch
      %1093 = sbr.rel (0) target = $region57
    $region56: #{tpu_custom_call.1} parent=1 // pred_region
      %s1095 = ssub.s32 1024, 1024
      %1096 = vsyncadd [#allocation5], %s1095
      %s1097 = sshll.u32 [#allocation9], 4
      %s1098 = int_to_ptr.vmem [resolvable:$true] %s1097
      %1103 = dma.vmem_to_hbm [thread:$0]  %s1098, 1024, %s8, [#allocation5], 64, 64, 4
    $region57: #{tpu_custom_call.1} parent=1 // pred_fallthru
      _
    // Predicated region
    $region58: #{tpu_custom_call.1} parent=1 // pred_check
      _
    $region59: #{tpu_custom_call.1} parent=1 // pred_check_branch
      %1105 = sbr.rel (0) target = $region61
    $region60: #{tpu_custom_call.1} parent=1 // pred_region
      %1106 = dma.done [#allocation5], 1024
    $region61: #{tpu_custom_call.1} parent=1 // pred_fallthru
      _
    %1107 = vsyncpa [#allocation4], 1
    %1108 = vsyncpa [#allocation7], 1
    %1109 = vsyncpa [#allocation5], 1

</llo_original>
